<compile_context>
chip_gen: v5e
topology: v5e:2x2
jax: 0.10.0
libtpu: 0.0.40
codegen_flags: <defaults>
</compile_context>

<pallas_src>
import math
import functools

import jax
import jax.numpy as jnp
from jax import lax
from jax.experimental import pallas as pl
from jax.experimental.pallas import tpu as pltpu


# --------------------------------------------------------------------------
# Helpers
# --------------------------------------------------------------------------

def _pick_tile(n, cap):
    """Largest divisor of n that is <= cap, preferring layout-friendly sizes.

    Returns a multiple of 128 when possible, else a multiple of 8, else the full
    dimension (always layout-legal). Guarantees exact divisibility (no tails)."""
    if n <= cap:
        return n
    for step in (128, 8):
        t = (cap // step) * step
        while t > 0:
            if n % t == 0:
                return t
            t -= step
    return n


def _compiler_params(semantics, est_bytes):
    """CompilerParams with a vmem limit derived from tile arithmetic (with margin)."""
    limit = int(min(max(2 * int(est_bytes), 32 * 1024 * 1024), 100 * 1024 * 1024))
    return pltpu.CompilerParams(dimension_semantics=semantics, vmem_limit_bytes=limit)


# --------------------------------------------------------------------------
# Kernel 1/2: fused dual projection  y = x @ [Wa | Wb] + [ba | bb] ; split into two outputs.
#   query path: Wa = Wq (query_proj, kept f32 for the residual), Wb = Wq @ Wq_mha  -> q_in
#   key/value:  Wa = Wk @ Wk_mha -> k_in,  Wb = Wv @ Wv_mha -> v_in
# --------------------------------------------------------------------------

def _dual_proj_kernel(x_ref, w_ref, b_ref, o1_ref, o2_ref, *, split, compute_dtype):
    x = x_ref[...].astype(compute_dtype)
    w = w_ref[...].astype(compute_dtype)
    y = jnp.dot(x, w, preferred_element_type=jnp.float32) + b_ref[...]
    o1_ref[...] = y[:, :split].astype(o1_ref.dtype)
    o2_ref[...] = y[:, split:].astype(o2_ref.dtype)


def dual_proj(x2d, w_cat, b_cat, out_dtypes, *, compute_dtype=jnp.bfloat16, tm_cap=512):
    M, D = x2d.shape
    H2 = w_cat.shape[1]
    H = H2 // 2
    TM = _pick_tile(M, tm_cap)
    grid = (M // TM,)

    ob1 = jnp.dtype(out_dtypes[0]).itemsize
    ob2 = jnp.dtype(out_dtypes[1]).itemsize
    est = 2 * (TM * D * 4 + D * H2 * 4 + H2 * 4 + TM * H * ob1 + TM * H * ob2)

    return pl.pallas_call(
        functools.partial(_dual_proj_kernel, split=H, compute_dtype=compute_dtype),
        out_shape=(jax.ShapeDtypeStruct((M, H), out_dtypes[0]),
                   jax.ShapeDtypeStruct((M, H), out_dtypes[1])),
        grid=grid,
        in_specs=[
            pl.BlockSpec((TM, D), lambda m: (m, 0)),
            pl.BlockSpec((D, H2), lambda m: (0, 0)),
            pl.BlockSpec((1, H2), lambda m: (0, 0)),
        ],
        out_specs=(pl.BlockSpec((TM, H), lambda m: (m, 0)),
                   pl.BlockSpec((TM, H), lambda m: (m, 0))),
        compiler_params=_compiler_params(("parallel",), est),
    )(x2d, w_cat, b_cat)


# --------------------------------------------------------------------------
# Kernel 3: flash-style multi-head attention + out-projection + residual + LayerNorm1
#   grid = (B, Lq/TQ, Lk/TK); Lk is an "arbitrary" reduction axis with online softmax.
#   Per-head running max/sum in VMEM scratch; un-normalized per-head outputs accumulate
#   into their lane slot of a (TQ, H) f32 scratch; ONE full out-proj matmul at the end.
# --------------------------------------------------------------------------

def _attn_kernel(q_ref, k_ref, v_ref, qp_ref, wo_ref, bo_ref, g_ref, bln_ref,
                 o_ref, acc_ref, m_ref, l_ref,
                 *, num_heads, scale, eps, compute_dtype):
    ki = pl.program_id(2)

    @pl.when(ki == 0)
    def _():
        acc_ref[...] = jnp.zeros_like(acc_ref)
        m_ref[...] = jnp.full_like(m_ref, -jnp.inf)
        l_ref[...] = jnp.zeros_like(l_ref)

    H = q_ref.shape[-1]
    hd = H // num_heads

    for h in range(num_heads):
        lo = h * hd
        qh = q_ref[0, :, lo:lo + hd].astype(compute_dtype)   # (TQ, hd)
        kh = k_ref[0, :, lo:lo + hd].astype(compute_dtype)   # (TK, hd)
        vh = v_ref[0, :, lo:lo + hd].astype(compute_dtype)   # (TK, hd)

        # scores: contract the last dim of both operands (no K transpose relayout)
        s = lax.dot_general(qh, kh, (((1,), (1,)), ((), ())),
                            preferred_element_type=jnp.float32) * scale    # (TQ, TK) f32

        m_prev = m_ref[h]                                                  # (TQ, 1)
        m_new = jnp.maximum(m_prev, jnp.max(s, axis=-1, keepdims=True))
        alpha = jnp.exp(m_prev - m_new)                                    # (TQ, 1)
        p = jnp.exp(s - m_new)                                             # (TQ, TK)
        l_ref[h] = alpha * l_ref[h] + jnp.sum(p, axis=-1, keepdims=True)
        m_ref[h] = m_new

        oh = jnp.dot(p.astype(compute_dtype), vh,
                     preferred_element_type=jnp.float32)                   # (TQ, hd)
        acc_ref[:, lo:lo + hd] = alpha * acc_ref[:, lo:lo + hd] + oh

    @pl.when(ki == pl.num_programs(2) - 1)
    def _():
        # normalize each head's lane slot by its softmax denominator (exact division)
        for h in range(num_heads):
            lo = h * hd
            acc_ref[:, lo:lo + hd] = acc_ref[:, lo:lo + hd] / l_ref[h]
        attn = acc_ref[...]                                                # (TQ, H) f32
        # single full-width out-projection (concat of heads is already lane-ordered)
        proj = jnp.dot(attn.astype(compute_dtype),
                       wo_ref[...].astype(compute_dtype),
                       preferred_element_type=jnp.float32) + bo_ref[...]
        hres = proj + qp_ref[0]                       # residual with query_proj (f32)
        mu = jnp.mean(hres, axis=-1, keepdims=True)
        var = jnp.mean((hres - mu) ** 2, axis=-1, keepdims=True)
        norm = (hres - mu) * lax.rsqrt(var + eps)
        o_ref[0] = (norm * g_ref[...] + bln_ref[...]).astype(o_ref.dtype)


def attn_block(q_in, k_in, v_in, query_proj, wo, bo, gamma, beta, num_heads,
               *, eps=1e-5, compute_dtype=jnp.bfloat16, tq_cap=256, tk_cap=256):
    B, Lq, H = q_in.shape
    Lk = k_in.shape[1]
    assert H % num_heads == 0
    hd = H // num_heads
    scale = 1.0 / math.sqrt(hd)

    TQ = _pick_tile(Lq, tq_cap)
    TK = _pick_tile(Lk, tk_cap)
    grid = (B, Lq // TQ, Lk // TK)

    qb = jnp.dtype(q_in.dtype).itemsize
    kb = jnp.dtype(k_in.dtype).itemsize
    est = (2 * (TQ * H * qb + 2 * TK * H * kb + TQ * H * 4 + H * H * 4
                + 4 * H * 4 + TQ * H * 4)
           + TQ * H * 4 + 2 * num_heads * TQ * 128 * 4)

    kern = functools.partial(_attn_kernel, num_heads=num_heads, scale=scale,
                             eps=eps, compute_dtype=compute_dtype)
    return pl.pallas_call(
        kern,
        out_shape=jax.ShapeDtypeStruct((B, Lq, H), jnp.float32),
        grid=grid,
        in_specs=[
            pl.BlockSpec((1, TQ, H), lambda b, qi, ki: (b, qi, 0)),   # q_in  (bf16)
            pl.BlockSpec((1, TK, H), lambda b, qi, ki: (b, ki, 0)),   # k_in  (bf16)
            pl.BlockSpec((1, TK, H), lambda b, qi, ki: (b, ki, 0)),   # v_in  (bf16)
            pl.BlockSpec((1, TQ, H), lambda b, qi, ki: (b, qi, 0)),   # query_proj (f32)
            pl.BlockSpec((H, H), lambda b, qi, ki: (0, 0)),           # Wo
            pl.BlockSpec((1, H), lambda b, qi, ki: (0, 0)),           # bo
            pl.BlockSpec((1, H), lambda b, qi, ki: (0, 0)),           # ln1 gamma
            pl.BlockSpec((1, H), lambda b, qi, ki: (0, 0)),           # ln1 beta
        ],
        out_specs=pl.BlockSpec((1, TQ, H), lambda b, qi, ki: (b, qi, 0)),
        scratch_shapes=[
            pltpu.VMEM((TQ, H), jnp.float32),            # un-normalized attention acc
            pltpu.VMEM((num_heads, TQ, 1), jnp.float32),  # running max per head
            pltpu.VMEM((num_heads, TQ, 1), jnp.float32),  # running sum per head
        ],
        compiler_params=_compiler_params(("parallel", "parallel", "arbitrary"), est),
    )(q_in, k_in, v_in, query_proj, wo, bo, gamma, beta)


# --------------------------------------------------------------------------
# Kernel 4: FFN (Linear -> ReLU -> Linear) + residual + LayerNorm2
#   grid = (row tiles, F tiles); F is an exact-divisor reduction axis with a VMEM f32
#   accumulator; bf16 MXU operands, f32 accumulation.
# --------------------------------------------------------------------------

def _ffn_ln_kernel(x_ref, w1_ref, b1_ref, w2_ref, b2_ref, g_ref, bln_ref,
                   o_ref, acc_ref, *, eps, compute_dtype):
    f = pl.program_id(1)

    @pl.when(f == 0)
    def _():
        acc_ref[...] = jnp.zeros_like(acc_ref)

    x = x_ref[...]
    h1 = jnp.dot(x.astype(compute_dtype), w1_ref[...].astype(compute_dtype),
                 preferred_element_type=jnp.float32) + b1_ref[...]
    h1 = jnp.maximum(h1, 0.0)
    acc_ref[...] += jnp.dot(h1.astype(compute_dtype), w2_ref[...].astype(compute_dtype),
                            preferred_element_type=jnp.float32)

    @pl.when(f == pl.num_programs(1) - 1)
    def _():
        y = acc_ref[...] + b2_ref[...]
        h = y + x_ref[...].astype(jnp.float32)                 # residual
        mu = jnp.mean(h, axis=-1, keepdims=True)
        var = jnp.mean((h - mu) ** 2, axis=-1, keepdims=True)
        norm = (h - mu) * lax.rsqrt(var + eps)
        o_ref[...] = (norm * g_ref[...] + bln_ref[...]).astype(o_ref.dtype)


def ffn_ln(x2d, w1, b1, w2, b2, gamma, beta, *, eps=1e-5,
           compute_dtype=jnp.bfloat16, tm_cap=512, tf_cap=512):
    M, H = x2d.shape
    F = w1.shape[1]
    TM = _pick_tile(M, tm_cap)
    TF = _pick_tile(F, tf_cap)
    if TF != F and TF % 128 != 0:       # TF is a lane dim of w1/b1 blocks; keep it legal
        TF = F
    grid = (M // TM, F // TF)

    est = 2 * (TM * H * 4 + H * TF * 4 + TF * 4 + TF * H * 4
               + 3 * H * 4 + TM * H * 4) + TM * H * 4

    return pl.pallas_call(
        functools.partial(_ffn_ln_kernel, eps=eps, compute_dtype=compute_dtype),
        out_shape=jax.ShapeDtypeStruct((M, H), jnp.float32),
        grid=grid,
        in_specs=[
            pl.BlockSpec((TM, H), lambda m, f: (m, 0)),
            pl.BlockSpec((H, TF), lambda m, f: (0, f)),
            pl.BlockSpec((1, TF), lambda m, f: (0, f)),
            pl.BlockSpec((TF, H), lambda m, f: (f, 0)),
            pl.BlockSpec((1, H), lambda m, f: (0, 0)),
            pl.BlockSpec((1, H), lambda m, f: (0, 0)),
            pl.BlockSpec((1, H), lambda m, f: (0, 0)),
        ],
        out_specs=pl.BlockSpec((TM, H), lambda m, f: (m, 0)),
        scratch_shapes=[pltpu.VMEM((TM, H), jnp.float32)],
        compiler_params=_compiler_params(("parallel", "arbitrary"), est),
    )(x2d, w1, b1, w2, b2, gamma, beta)


# --------------------------------------------------------------------------
# Parameter construction (deterministic, PyTorch-Linear-style uniform init) + offline folding
# --------------------------------------------------------------------------

def _uniform(key, shape, bound, dtype=jnp.float32):
    return jax.random.uniform(key, shape, dtype=dtype, minval=-bound, maxval=bound)


def init_cross_attention_params(key, query_dim, key_dim, hidden_dim,
                                num_heads, ffn_multiplier, dtype=jnp.float32):
    H = hidden_dim
    F = hidden_dim * ffn_multiplier
    keys = jax.random.split(key, 24)
    it = iter(keys)

    def lin(din, dout):
        bound = 1.0 / math.sqrt(din)
        kw, kb = next(it), next(it)
        # stored pre-transposed: (din, dout)
        return _uniform(kw, (din, dout), bound, dtype), _uniform(kb, (1, dout), bound, dtype)

    wq, bq = lin(query_dim, H)
    wk, bk = lin(key_dim, H)
    wv, bv = lin(key_dim, H)
    # nn.MultiheadAttention internal in_proj (q/k/v) and out_proj
    mha_wq, mha_bq = lin(H, H)
    mha_wk, mha_bk = lin(H, H)
    mha_wv, mha_bv = lin(H, H)
    mha_wo, mha_bo = lin(H, H)
    ffn_w1, ffn_b1 = lin(H, F)
    ffn_w2, ffn_b2 = lin(F, H)

    # Offline folds (no nonlinearity between the stacked linears):
    #   q_in = query @ (Wq @ Wq_mha) + (bq @ Wq_mha + bq_mha)
    #   k_in = key   @ (Wk @ Wk_mha) + (bk @ Wk_mha + bk_mha)    (same for v)
    wq_in = wq @ mha_wq
    bq_in = bq @ mha_wq + mha_bq
    wk_f = wk @ mha_wk
    bk_f = bk @ mha_wk + mha_bk
    wv_f = wv @ mha_wv
    bv_f = bv @ mha_wv + mha_bv

    return {
        "q_w_cat": jnp.concatenate([wq, wq_in], axis=1),    # (Dq, 2H): [query_proj | q_in]
        "q_b_cat": jnp.concatenate([bq, bq_in], axis=1),
        "kv_w_cat": jnp.concatenate([wk_f, wv_f], axis=1),  # (Dk, 2H): [k_in | v_in]
        "kv_b_cat": jnp.concatenate([bk_f, bv_f], axis=1),
        "mha_wo": mha_wo, "mha_bo": mha_bo,
        "ffn_w1": ffn_w1, "ffn_b1": ffn_b1,
        "ffn_w2": ffn_w2, "ffn_b2": ffn_b2,
        "ln1_g": jnp.ones((1, H), dtype), "ln1_b": jnp.zeros((1, H), dtype),
        "ln2_g": jnp.ones((1, H), dtype), "ln2_b": jnp.zeros((1, H), dtype),
        "num_heads": num_heads,
    }


# --------------------------------------------------------------------------
# Forward pass (mirrors CrossAttention.forward with need_weights=False,
# key_padding_mask=None, attn_mask=None, dropout inactive; value arg is unused
# by the reference module since value_proj is computed from `key`).
# --------------------------------------------------------------------------

def cross_attention_forward(params, query, key, *, compute_dtype=jnp.bfloat16):
    num_heads = params["num_heads"]
    B, Lq, Dq = query.shape
    _, Lk, Dk = key.shape
    H = params["ln1_g"].shape[1]

    # Row-flattened projections ((B*L, D) @ (D, 2H)) -- free reshapes, better MXU fill.
    q2 = query.reshape(B * Lq, Dq)
    k2 = key.reshape(B * Lk, Dk)

    query_proj2, q_in2 = dual_proj(q2, params["q_w_cat"], params["q_b_cat"],
                                   (jnp.float32, compute_dtype),
                                   compute_dtype=compute_dtype)
    k_in2, v_in2 = dual_proj(k2, params["kv_w_cat"], params["kv_b_cat"],
                             (compute_dtype, compute_dtype),
                             compute_dtype=compute_dtype)

    query_proj = query_proj2.reshape(B, Lq, H)
    q_in = q_in2.reshape(B, Lq, H)
    k_in = k_in2.reshape(B, Lk, H)
    v_in = v_in2.reshape(B, Lk, H)

    # Flash-style attention + out-proj + residual + LayerNorm1.
    attn_ln = attn_block(q_in, k_in, v_in, query_proj,
                         params["mha_wo"], params["mha_bo"],
                         params["ln1_g"], params["ln1_b"], num_heads,
                         compute_dtype=compute_dtype)

    # FFN + residual + LayerNorm2.
    out2 = ffn_ln(attn_ln.reshape(B * Lq, H),
                  params["ffn_w1"], params["ffn_b1"],
                  params["ffn_w2"], params["ffn_b2"],
                  params["ln2_g"], params["ln2_b"],
                  compute_dtype=compute_dtype)
    return out2.reshape(B, Lq, H)


# --------------------------------------------------------------------------
# Example
# --------------------------------------------------------------------------

if __name__ == "__main__":
    # small shapes consistent with the module
    B, Lq, Lk = 2, 8, 8
    QUERY_DIM, KEY_DIM, HIDDEN_DIM = 32, 32, 32
    NUM_HEADS, FFN_MULT = 4, 4

    root = jax.random.PRNGKey(0)
    k_params, k_q, k_k = jax.random.split(root, 3)

    params = init_cross_attention_params(
        k_params, QUERY_DIM, KEY_DIM, HIDDEN_DIM, NUM_HEADS, FFN_MULT)

    query = jax.random.normal(k_q, (B, Lq, QUERY_DIM), dtype=jnp.float32)
    key = jax.random.normal(k_k, (B, Lk, KEY_DIM), dtype=jnp.float32)

    out = cross_attention_forward(params, query, key)
    out = jax.block_until_ready(out)

    assert out.shape == (B, Lq, HIDDEN_DIM)
    assert out.dtype == jnp.float32
    assert bool(jnp.all(jnp.isfinite(out)))
    print("KERNEL_OK")
</pallas_src>

<mosaic_0001>
module attributes {stable_mosaic.version = 11 : i64} {
  func.func @_dual_proj_kernel(%arg0: i32, %arg1: memref<16x32xf32, #tpu.memory_space<vmem>>, %arg2: memref<32x64xf32, #tpu.memory_space<vmem>>, %arg3: memref<1x64xf32, #tpu.memory_space<vmem>>, %arg4: memref<16x32xf32, #tpu.memory_space<vmem>>, %arg5: memref<16x32xbf16, #tpu.memory_space<vmem>>) attributes {dimension_semantics = [#tpu.dimension_semantics<parallel>], iteration_bounds = array<i64: 1>, scalar_prefetch = 0 : i64, scratch_operands = 0 : i64, tpu.core_type = #tpu.core_type<tc>, window_params = [{transform_indices = @transform_0, window_bounds = array<i64: 16, 32>}, {pipeline_mode = #tpu.pipeline_mode<synchronous>, transform_indices = @transform_1, window_bounds = array<i64: 32, 64>}, {pipeline_mode = #tpu.pipeline_mode<synchronous>, transform_indices = @transform_2, window_bounds = array<i64: 1, 64>}, {transform_indices = @transform_3, window_bounds = array<i64: 16, 32>}, {transform_indices = @transform_4, window_bounds = array<i64: 16, 32>}]} {
    %c0 = arith.constant 0 : index
    %c0_0 = arith.constant 0 : index
    %0 = vector.load %arg1[%c0, %c0_0] : memref<16x32xf32, #tpu.memory_space<vmem>>, vector<16x32xf32>
    %1 = arith.truncf %0 : vector<16x32xf32> to vector<16x32xbf16>
    %c0_1 = arith.constant 0 : index
    %c0_2 = arith.constant 0 : index
    %2 = vector.load %arg2[%c0_1, %c0_2] : memref<32x64xf32, #tpu.memory_space<vmem>>, vector<32x64xf32>
    %3 = arith.truncf %2 : vector<32x64xf32> to vector<32x64xbf16>
    %cst = arith.constant dense<0.000000e+00> : vector<16x64xf32>
    %4 = tpu.matmul %1, %3, %cst {dimension_numbers = #tpu.dot_dimension_numbers<[1], [0], [0], [1], [0, 0, 1, 1], [], []>} : vector<16x32xbf16>, vector<32x64xbf16>, vector<16x64xf32> -> vector<16x64xf32>
    %c0_3 = arith.constant 0 : index
    %c0_4 = arith.constant 0 : index
    %5 = vector.load %arg3[%c0_3, %c0_4] : memref<1x64xf32, #tpu.memory_space<vmem>>, vector<1x64xf32>
    %6 = vector.broadcast %5 : vector<1x64xf32> to vector<16x64xf32>
    %7 = arith.addf %4, %6 : vector<16x64xf32>
    %8 = vector.extract_strided_slice %7 {offsets = [0, 0], sizes = [16, 32], strides = [1, 1]} : vector<16x64xf32> to vector<16x32xf32>
    %c0_5 = arith.constant 0 : index
    %c0_6 = arith.constant 0 : index
    %9 = vector.load %arg4[%c0_5, %c0_6] : memref<16x32xf32, #tpu.memory_space<vmem>>, vector<16x32xf32>
    tpu.vector_store %arg4[%c0_5, %c0_6], %8 {strides = array<i32>} : memref<16x32xf32, #tpu.memory_space<vmem>>, vector<16x32xf32>,
    %10 = vector.extract_strided_slice %7 {offsets = [0, 32], sizes = [16, 32], strides = [1, 1]} : vector<16x64xf32> to vector<16x32xf32>
    %11 = arith.truncf %10 : vector<16x32xf32> to vector<16x32xbf16>
    %c0_7 = arith.constant 0 : index
    %c0_8 = arith.constant 0 : index
    %12 = vector.load %arg5[%c0_7, %c0_8] : memref<16x32xbf16, #tpu.memory_space<vmem>>, vector<16x32xbf16>
    tpu.vector_store %arg5[%c0_7, %c0_8], %11 {strides = array<i32>} : memref<16x32xbf16, #tpu.memory_space<vmem>>, vector<16x32xbf16>,
    return
  }
  func.func @transform_0(%arg0: i32) -> (i32, i32) {
    %c0_i32 = arith.constant 0 : i32
    %c0_i32_0 = arith.constant 0 : i32
    return %arg0, %c0_i32 : i32, i32
  }
  func.func @transform_1(%arg0: i32) -> (i32, i32) {
    %c0_i32 = arith.constant 0 : i32
    %c0_i32_0 = arith.constant 0 : i32
    %c0_i32_1 = arith.constant 0 : i32
    return %c0_i32, %c0_i32_0 : i32, i32
  }
  func.func @transform_2(%arg0: i32) -> (i32, i32) {
    %c0_i32 = arith.constant 0 : i32
    %c0_i32_0 = arith.constant 0 : i32
    %c0_i32_1 = arith.constant 0 : i32
    return %c0_i32, %c0_i32_0 : i32, i32
  }
  func.func @transform_3(%arg0: i32) -> (i32, i32) {
    %c0_i32 = arith.constant 0 : i32
    %c0_i32_0 = arith.constant 0 : i32
    return %arg0, %c0_i32 : i32, i32
  }
  func.func @transform_4(%arg0: i32) -> (i32, i32) {
    %c0_i32 = arith.constant 0 : i32
    %c0_i32_0 = arith.constant 0 : i32
    return %arg0, %c0_i32 : i32, i32
  }
}

</mosaic_0001>

<llo_original>
// kernel: tpu_custom_call.1
$region0: #{tpu_custom_call.1}
  #allocation0 [shape = 'u32[]', space=smem, size = 0x4, offset = 0x4, fixed_abs, tag = 'smem constant byte address 0x4 - core index']
  #allocation1 [shape = 'u32[72,128]{1,0:T(1,128)}', space=vmem, size = 0x9000, scoped, tag = 'internal scratch']
  %s0 = inlined_call_operand.hbm [shape: f32[16,32], index: 0, kind: input, shape index: {}]
  %s1 = inlined_call_operand.hbm [shape: f32[32,64], index: 1, kind: input, shape index: {}]
  %s2 = inlined_call_operand.vmem [shape: f32[1,64], index: 2, kind: input, shape index: {}]
  %s3 = inlined_call_operand.hbm [shape: f32[16,32], index: 3, kind: output, shape index: {0}]
  %s4 = inlined_call_operand.hbm [shape: bf16[16,32], index: 4, kind: output, shape index: {1}]
  %5 = xla_tuple %s3, %s4
  %s6 = sld [smem:[#allocation0]]
  $region38: #{tpu_custom_call.1} parent=0
    _
  %s8 = ssub.s32 1, %s6
  %s9 = scalar_select 0, %s8, %s6
  $region1: #{tpu_custom_call.1} parent=0
    #allocation2 [shape = 'u8[8192]{0}', space=vmem, size = 0x2000, scoped, tag = 'input window, operand 0, single buffered']
    #allocation3 [shape = 's32[1]{0}', space=sflag, size = 0x4, scoped, tag = 'scoped memory for tpu_custom_call.1']
    #allocation4 [shape = 's32[1]{0}', space=sflag, size = 0x4, scoped, tag = 'scoped memory for tpu_custom_call.1']
    #allocation5 [shape = 'u8[16384]{0}', space=vmem, size = 0x4000, scoped, tag = 'input window, operand 1, single buffered']
    #allocation6 [shape = 's32[1]{0}', space=sflag, size = 0x4, scoped, tag = 'scoped memory for tpu_custom_call.1']
    #allocation7 [shape = 'u8[8192]{0}', space=vmem, size = 0x2000, scoped, tag = 'output window, operand 0, single buffered']
    #allocation8 [shape = 'u8[4096]{0}', space=vmem, size = 0x1000, scoped, tag = 'output window, operand 1, single buffered']
    #allocation9 [shape = 's32[1]{0}', space=sflag, size = 0x4, scoped, tag = 'scoped memory for tpu_custom_call.1']
    %10 = vsyncpa [#allocation3], 0
    %11 = vsyncpa [#allocation6], 0
    %12 = vsyncpa [#allocation4], 0
    %13 = vsyncpa [#allocation9], 0
    // Predicated region
    $region2: #{tpu_custom_call.1} parent=1 // pred_check
      _
    $region3: #{tpu_custom_call.1} parent=1 // pred_check_branch
      %15 = sbr.rel (0) target = $region5
    $region4: #{tpu_custom_call.1} parent=1 // pred_region
      %17 = vsyncadd [#allocation3], 0
      %s18 = sshll.u32 %s0, 4
      %s19 = int_to_ptr.hbm [resolvable:$true] %s18
      %s20 = sshll.u32 [#allocation2], 4
      %s21 = int_to_ptr.vmem [resolvable:$true] %s20
      %26 = dma.hbm_to_vmem [thread:$0]  %s19, 256, %s21, [#allocation3], 128, 128, 8
    $region5: #{tpu_custom_call.1} parent=1 // pred_fallthru
      _
    // Predicated region
    $region6: #{tpu_custom_call.1} parent=1 // pred_check
      _
    $region7: #{tpu_custom_call.1} parent=1 // pred_check_branch
      %28 = sbr.rel (0) target = $region9
    $region8: #{tpu_custom_call.1} parent=1 // pred_region
      %30 = vsyncadd [#allocation6], 0
      %s31 = sshll.u32 %s1, 4
      %s32 = int_to_ptr.hbm [resolvable:$true] %s31
      %s33 = sshll.u32 [#allocation5], 4
      %s34 = int_to_ptr.vmem [resolvable:$true] %s33
      %39 = dma.hbm_to_vmem [thread:$0]  %s32, 512, %s34, [#allocation6], 128, 128, 8
    $region9: #{tpu_custom_call.1} parent=1 // pred_fallthru
      _
    // Predicated region
    $region10: #{tpu_custom_call.1} parent=1 // pred_check
      _
    $region11: #{tpu_custom_call.1} parent=1 // pred_check_branch
      %41 = sbr.rel (0) target = $region13
    $region12: #{tpu_custom_call.1} parent=1 // pred_region
      _
    $region13: #{tpu_custom_call.1} parent=1 // pred_fallthru
      _
    // Predicated region
    $region14: #{tpu_custom_call.1} parent=1 // pred_check
      _
    $region15: #{tpu_custom_call.1} parent=1 // pred_check_branch
      %43 = sbr.rel (0) target = $region17
    $region16: #{tpu_custom_call.1} parent=1 // pred_region
      %45 = dma.done [#allocation3], 256
    $region17: #{tpu_custom_call.1} parent=1 // pred_fallthru
      _
    // Predicated region
    $region18: #{tpu_custom_call.1} parent=1 // pred_check
      _
    $region19: #{tpu_custom_call.1} parent=1 // pred_check_branch
      %47 = sbr.rel (0) target = $region21
    $region20: #{tpu_custom_call.1} parent=1 // pred_region
      %49 = dma.done [#allocation6], 512
    $region21: #{tpu_custom_call.1} parent=1 // pred_fallthru
      _
    %v51 = vld [vmem:[#allocation2] sm:$0xff]
    %v52 = vld [vmem:[#allocation2 + $0x8] sm:$0xff]
    %v53 = vpack.c.bf16 %v52, %v51
    %v54 = vld [vmem:[#allocation5] sm:$0xff]
    %v55 = vld [vmem:[#allocation5 + $0x8] sm:$0xff]
    %v56 = vld [vmem:[#allocation5 + $0x10] sm:$0xff]
    %v57 = vld [vmem:[#allocation5 + $0x18] sm:$0xff]
    %v58 = vpack.c.bf16 %v55, %v54
    %v59 = vpack.c.bf16 %v57, %v56
    %v60 = vld [vmem:[%s2] sm:$0x1]
    %v62 = vperm.slane %v60, 0
    %vm64 = vcmask 261120
    %v66 = vsel %vm64, %v53, 0
    %68 = vmatpush.bf16.msra.mxu0 0
    %69 = vmatpush.bf16.msra.mxu0 0
    %70 = vmatpush.bf16.msra.mxu0 0
    %71 = vmatpush.bf16.msra.mxu0 0
    %72 = vmatpush.bf16.msra.mxu0 0
    %73 = vmatpush.bf16.msra.mxu0 0
    %74 = vmatpush.bf16.msra.mxu0 %v59
    %75 = vmatpush.bf16.msra.mxu0 %v58
    %76 = vmatmul.bf16.gmra.mxu0 %v66
    %v77 = vpop.f32.mrf.mxu0
    %v78 = vadd.f32 %v62, %v77
    %v79 = vpop.f32.mrf.mxu0
    %v80 = vadd.f32 %v62, %v79
    %81 = vdwg.mxu0
    %82 = vst.msk [vmem:[#allocation7] sm:$0xff] %vm64, %v78
    %83 = vst.msk [vmem:[#allocation7 + $0x8] sm:$0xff] %vm64, %v80
    %v84 = vpack.c.bf16 %v78, %v78
    %v85 = vpack.c.bf16 %v80, %v80
    %88 = vrot.lane.b32.xlu0 %v84, 96
    %v89 = vpop.permute.xlu0 %88
    %90 = vrot.lane.b32.xlu0 %v85, 96
    %v91 = vpop.permute.xlu0 %90
    %vm94 = vcmask 257024
    %95 = vst.msk [vmem:[#allocation8] sm:$0xf] %vm94, %v89
    %96 = vst.msk [vmem:[#allocation8 + $0x4] sm:$0xf] %vm94, %v91
    // Predicated region
    $region22: #{tpu_custom_call.1} parent=1 // pred_check
      _
    $region23: #{tpu_custom_call.1} parent=1 // pred_check_branch
      %98 = sbr.rel (0) target = $region25
    $region24: #{tpu_custom_call.1} parent=1 // pred_region
      %100 = vsyncadd [#allocation4], 0
      %s101 = sshll.u32 [#allocation7], 4
      %s102 = int_to_ptr.vmem [resolvable:$true] %s101
      %s103 = sshll.u32 %s3, 4
      %s104 = int_to_ptr.hbm [resolvable:$true] %s103
      %109 = dma.vmem_to_hbm [thread:$0]  %s102, 256, %s104, [#allocation4], 128, 128, 8
    $region25: #{tpu_custom_call.1} parent=1 // pred_fallthru
      _
    // Predicated region
    $region26: #{tpu_custom_call.1} parent=1 // pred_check
      _
    $region27: #{tpu_custom_call.1} parent=1 // pred_check_branch
      %111 = sbr.rel (0) target = $region29
    $region28: #{tpu_custom_call.1} parent=1 // pred_region
      %113 = vsyncadd [#allocation9], 0
      %s114 = sshll.u32 [#allocation8], 4
      %s115 = int_to_ptr.vmem [resolvable:$true] %s114
      %s116 = sshll.u32 %s4, 4
      %s117 = int_to_ptr.hbm [resolvable:$true] %s116
      %122 = dma.vmem_to_hbm [thread:$0]  %s115, 128, %s117, [#allocation9], 64, 64, 4
    $region29: #{tpu_custom_call.1} parent=1 // pred_fallthru
      _
    // Predicated region
    $region30: #{tpu_custom_call.1} parent=1 // pred_check
      _
    $region31: #{tpu_custom_call.1} parent=1 // pred_check_branch
      %124 = sbr.rel (0) target = $region33
    $region32: #{tpu_custom_call.1} parent=1 // pred_region
      %126 = dma.done [#allocation4], 256
    $region33: #{tpu_custom_call.1} parent=1 // pred_fallthru
      _
    // Predicated region
    $region34: #{tpu_custom_call.1} parent=1 // pred_check
      _
    $region35: #{tpu_custom_call.1} parent=1 // pred_check_branch
      %128 = sbr.rel (0) target = $region37
    $region36: #{tpu_custom_call.1} parent=1 // pred_region
      %130 = dma.done [#allocation9], 128
    $region37: #{tpu_custom_call.1} parent=1 // pred_fallthru
      _
    %131 = vsyncpa [#allocation3], 1
    %132 = vsyncpa [#allocation6], 1
    %133 = vsyncpa [#allocation4], 1
    %134 = vsyncpa [#allocation9], 1

</llo_original>
